<compile_context>
chip_gen: v6e
topology: v6e:2x2x1
jax: 0.10.0
libtpu: 0.0.40
codegen_flags: <defaults>
</compile_context>

<pallas_src>
import functools

import jax
import jax.numpy as jnp
from jax.experimental import pallas as pl
from jax.experimental.pallas import tpu as pltpu


# ----------------------------- kernels --------------------------------------


def _kv_proj_kernel(x_ref, w_ref, b_ref, k_ref, v_ref, *, cp):
    # x_ref: (TS, Cp) f32 ; w_ref: (Cp, 2Cp) bf16 ; b_ref: (1, 2Cp) f32
    x = x_ref[...].astype(w_ref.dtype)                       # bf16 MXU operand
    kv = jnp.dot(x, w_ref[...], preferred_element_type=jnp.float32) + b_ref[...]
    k_ref[...] = kv[:, :cp].astype(k_ref.dtype)
    v_ref[...] = kv[:, cp:].astype(v_ref.dtype)


def _flash_attn_kernel(x_ref, k_ref, v_ref, wq_ref, bq_ref, wo_ref, bo_ref,
                       o_ref, q_sc, m_sc, l_sc, acc_sc, *, tk):
    ki = pl.program_id(2)

    @pl.when(ki == 0)
    def _init():
        # Fused q projection (1/sqrt(C) folded into wq/bq at prep time),
        # computed once per (b, q-tile) and cached in VMEM scratch.
        xq = x_ref[...].astype(wq_ref.dtype)
        q = jnp.dot(xq, wq_ref[...],
                    preferred_element_type=jnp.float32) + bq_ref[...]
        q_sc[...] = q.astype(q_sc.dtype)
        m_sc[...] = jnp.full(m_sc.shape, -jnp.inf, dtype=m_sc.dtype)
        l_sc[...] = jnp.zeros(l_sc.shape, dtype=l_sc.dtype)
        acc_sc[...] = jnp.zeros(acc_sc.shape, dtype=acc_sc.dtype)

    q = q_sc[...]

    def step(kc, vc, m, l, acc):
        # scores: contract the channel axis directly (no k.T materialization);
        # bf16 MXU operands, f32 accumulation, f32 softmax math (v5e-safe).
        s = jax.lax.dot_general(q, kc, (((1,), (1,)), ((), ())),
                                preferred_element_type=jnp.float32)
        m_new = jnp.maximum(m, jnp.max(s, axis=-1, keepdims=True))
        alpha = jnp.exp(m - m_new)
        p = jnp.exp(s - m_new)
        l_new = alpha * l + jnp.sum(p, axis=-1, keepdims=True)
        acc_new = alpha * acc + jnp.dot(p.astype(vc.dtype), vc,
                                        preferred_element_type=jnp.float32)
        return m_new, l_new, acc_new

    n_chunks = k_ref.shape[0] // tk
    m0, l0, acc0 = m_sc[...], l_sc[...], acc_sc[...]
    if n_chunks <= 1:
        m, l, acc = step(k_ref[...], v_ref[...], m0, l0, acc0)
    else:
        def body(c, carry):
            start = pl.multiple_of(c * tk, tk)
            return step(k_ref[pl.ds(start, tk), :],
                        v_ref[pl.ds(start, tk), :], *carry)
        m, l, acc = jax.lax.fori_loop(0, n_chunks, body, (m0, l0, acc0))
    m_sc[...], l_sc[...], acc_sc[...] = m, l, acc

    @pl.when(ki == pl.num_programs(2) - 1)
    def _finalize():
        out = acc_sc[...] * pl.reciprocal(l_sc[...], approx=False)   # (TQ, Cp)
        proj = jnp.dot(out.astype(wo_ref.dtype), wo_ref[...],
                       preferred_element_type=jnp.float32) + bo_ref[...]
        o_ref[...] = (proj + x_ref[...]).astype(o_ref.dtype)


# ------------------------- tiling / VMEM budgeting ---------------------------


def _round_up(n, m):
    return ((n + m - 1) // m) * m


def _vmem_budget_bytes():
    """~80% of per-core VMEM (v5e/v6e 128 MiB, v7x 64 MiB); safe fallback."""
    try:
        cap = int(pltpu.get_tpu_info().vmem_capacity_bytes)
    except Exception:
        cap = 64 * 1024 * 1024
    return int(cap * 0.8)


def _proj_vmem_bytes(ts, cp):
    return (2 * ts * cp * 4            # x tile (f32), double-buffered
            + 2 * 2 * ts * cp * 2      # k & v output tiles (bf16), dbl-buffered
            + 2 * cp * 2 * cp * 2      # fused W_kv (bf16), dbl-buffered const
            + 2 * 2 * cp * 4           # fused b_kv (f32), dbl-buffered const
            + ts * 2 * cp * 4          # kv f32 temporary
            + ts * cp * 2)             # bf16 cast of x


def _attn_vmem_bytes(tq, tkblk, tk, cp):
    return (2 * tq * cp * 4            # x tile (f32), double-buffered
            + 2 * 2 * tkblk * cp * 2   # k & v blocks (bf16), double-buffered
            + 2 * 2 * cp * cp * 2      # wq & wo (bf16), dbl-buffered consts
            + 2 * 2 * cp * 4           # bq & bo (f32), dbl-buffered consts
            + 2 * tq * cp * 4          # output tile (f32), double-buffered
            + tq * cp * 2              # q scratch (bf16)
            + 2 * tq * 4               # m, l scratch
            + 2 * tq * cp * 4          # acc scratch + loop-carry copy
            + 3 * tq * tk * 4)         # score / prob temporaries


def _choose_proj_tile(s, cp, budget):
    for ts in (512, 256, 128):
        if s % ts == 0 and _proj_vmem_bytes(ts, cp) <= budget:
            return ts
    return 128 if s % 128 == 0 else s   # small / irregular S: full-dim block


def _choose_attn_tiles(s, cp, budget):
    """Return (TQ, TK, TKBLK): TKBLK is the per-grid-step KV block (== S when
    K/V can be made batch-resident in VMEM, otherwise the largest that fits)."""
    for tq in (512, 256, 128):
        if s % tq:
            continue
        tk = tq
        n = s // tk
        for nb in range(n, 0, -1):                 # prefer fully resident K/V
            if n % nb:
                continue
            tkblk = nb * tk
            if _attn_vmem_bytes(tq, tkblk, tk, cp) <= budget:
                return tq, tk, tkblk
    if s % 128 == 0:
        return 128, 128, 128
    return s, s, s                                 # small / irregular S


# ----------------------------- wrapper ---------------------------------------


def _prepare_params(params, c, cp, scale):
    """Pack torch-layout 1x1-conv weights into padded per-token matrices."""
    w_qkv, b_qkv = params["w_qkv"], params["b_qkv"]   # (3C, C), (3C,)
    w_out, b_out = params["w_out"], params["b_out"]   # (C, C),  (C,)
    pad_w = lambda wt: jnp.pad(wt, ((0, cp - c), (0, cp - c)))   # (C,C)->(Cp,Cp)
    pad_b = lambda b: jnp.pad(b, (0, cp - c)).reshape(1, cp)     # (C,) ->(1,Cp)
    wq, wk, wv = w_qkv[:c], w_qkv[c:2 * c], w_qkv[2 * c:]
    # 1/sqrt(C) folded into the q projection (per-channel, not per-score).
    wq_p = (pad_w(wq.T) * scale).astype(jnp.bfloat16)            # (Cp, Cp) bf16
    bq_p = pad_b(b_qkv[:c]) * scale                              # (1, Cp)  f32
    w_kv = jnp.concatenate([pad_w(wk.T), pad_w(wv.T)],
                           axis=1).astype(jnp.bfloat16)          # (Cp, 2Cp)
    b_kv = jnp.concatenate([pad_b(b_qkv[c:2 * c]),
                            pad_b(b_qkv[2 * c:])], axis=1)       # (1, 2Cp) f32
    wo = pad_w(w_out.T).astype(jnp.bfloat16)                     # (Cp, Cp) bf16
    bo = pad_b(b_out)                                            # (1, Cp)  f32
    return wq_p, bq_p, w_kv, b_kv, wo, bo


def attention_block_pallas(x_nchw, params):
    """x_nchw: (B, C, H, W) float32. Returns (B, C, H, W)."""
    B, C, H, W = x_nchw.shape
    S = H * W
    Cp = _round_up(C, 128)               # lane-dense channel dim (zero-padded)
    scale = C ** (-0.5)

    # NCHW -> (B, S, Cp) tokens; zero channel padding is math-neutral because
    # padded weight rows/cols and biases are zero.
    # TODO(synk): fold this transpose into kernel 1 (read x as (B, Cp, S) and
    # contract the channel axis) to avoid the full-tensor XLA transpose.
    x_tok = jnp.transpose(x_nchw, (0, 2, 3, 1)).reshape(B, S, C)
    if Cp != C:
        x_tok = jnp.pad(x_tok, ((0, 0), (0, 0), (0, Cp - C)))

    wq, bq, w_kv, b_kv, wo, bo = _prepare_params(params, C, Cp, scale)
    budget = _vmem_budget_bytes()

    # ---- kernel 1: fused K/V projection (bf16 MXU operands) -----------------
    TS = _choose_proj_tile(S, Cp, budget)
    proj_vmem = _proj_vmem_bytes(TS, Cp)
    const2d = lambda b, i: (0, 0)
    k, v = pl.pallas_call(
        functools.partial(_kv_proj_kernel, cp=Cp),
        out_shape=tuple(jax.ShapeDtypeStruct((B, S, Cp), jnp.bfloat16)
                        for _ in range(2)),
        grid_spec=pltpu.PrefetchScalarGridSpec(
            num_scalar_prefetch=0,
            grid=(B, S // TS),
            in_specs=[
                pl.BlockSpec((None, TS, Cp), lambda b, i: (b, i, 0)),
                pl.BlockSpec((Cp, 2 * Cp), const2d),
                pl.BlockSpec((1, 2 * Cp), const2d),
            ],
            out_specs=[pl.BlockSpec((None, TS, Cp), lambda b, i: (b, i, 0))
                       for _ in range(2)],
        ),
        compiler_params=pltpu.CompilerParams(
            dimension_semantics=("parallel", "parallel"),
            vmem_limit_bytes=min(max(proj_vmem + proj_vmem // 4,
                                     32 * 1024 * 1024), budget)),
        cost_estimate=pl.CostEstimate(
            flops=2 * B * S * Cp * 2 * Cp,
            transcendentals=0,
            bytes_accessed=B * S * Cp * (4 + 2 * 2)
            + Cp * 2 * Cp * 2 + 2 * Cp * 4),
    )(x_tok, w_kv, b_kv)

    # ---- kernel 2: fused q-proj + flash attention + out-proj + residual -----
    TQ, TK, TKBLK = _choose_attn_tiles(S, Cp, budget)
    attn_vmem = _attn_vmem_bytes(TQ, TKBLK, TK, Cp)
    # NOTE: with TKBLK == S the KV grid axis has extent 1 and the K/V block
    # index depends only on b, so K/V are DMA'd once per batch and reused
    # across all q tiles (no re-streaming).  Megacore sharding lands on the
    # two leading "parallel" axes, so B=1 still splits work along q tiles.
    out_tok = pl.pallas_call(
        functools.partial(_flash_attn_kernel, tk=TK),
        out_shape=jax.ShapeDtypeStruct((B, S, Cp), x_tok.dtype),
        grid_spec=pltpu.PrefetchScalarGridSpec(
            num_scalar_prefetch=0,
            grid=(B, S // TQ, S // TKBLK),
            in_specs=[
                pl.BlockSpec((None, TQ, Cp), lambda b, qi, ki: (b, qi, 0)),    # x
                pl.BlockSpec((None, TKBLK, Cp), lambda b, qi, ki: (b, ki, 0)),  # k
                pl.BlockSpec((None, TKBLK, Cp), lambda b, qi, ki: (b, ki, 0)),  # v
                pl.BlockSpec((Cp, Cp), lambda b, qi, ki: (0, 0)),              # wq
                pl.BlockSpec((1, Cp), lambda b, qi, ki: (0, 0)),               # bq
                pl.BlockSpec((Cp, Cp), lambda b, qi, ki: (0, 0)),              # wo
                pl.BlockSpec((1, Cp), lambda b, qi, ki: (0, 0)),               # bo
            ],
            out_specs=pl.BlockSpec((None, TQ, Cp),
                                   lambda b, qi, ki: (b, qi, 0)),
            scratch_shapes=[
                pltpu.VMEM((TQ, Cp), jnp.bfloat16),   # cached q tile
                pltpu.VMEM((TQ, 1), jnp.float32),     # running max m
                pltpu.VMEM((TQ, 1), jnp.float32),     # running sum l
                pltpu.VMEM((TQ, Cp), jnp.float32),    # output accumulator
            ],
        ),
        compiler_params=pltpu.CompilerParams(
            dimension_semantics=("parallel", "parallel", "arbitrary"),
            vmem_limit_bytes=min(max(attn_vmem + attn_vmem // 4,
                                     32 * 1024 * 1024), budget)),
        cost_estimate=pl.CostEstimate(
            flops=B * (4 * S * S * Cp + 4 * S * Cp * Cp),
            transcendentals=B * S * S,
            bytes_accessed=B * S * Cp * (2 * 2 + 4 + 4)
            + 2 * Cp * Cp * 2 + 2 * Cp * 4),
    )(x_tok, k, v, wq, bq, wo, bo)

    # (B, S, Cp) -> drop channel padding -> NCHW
    out = out_tok[..., :C].reshape(B, H, W, C)
    return jnp.transpose(out, (0, 3, 1, 2))


# --------------------------- params & reference ------------------------------


def init_params(key, in_channels):
    """Deterministic init, torch layout: Conv2d weight (out, in) with k=1."""
    C = in_channels
    k = jax.random.split(key, 4)
    std = 0.1
    return {
        "w_qkv": jax.random.normal(k[0], (3 * C, C), jnp.float32) * std,
        "b_qkv": jax.random.normal(k[1], (3 * C,), jnp.float32) * std,
        "w_out": jax.random.normal(k[2], (C, C), jnp.float32) * std,
        "b_out": jax.random.normal(k[3], (C,), jnp.float32) * std,
    }


def attention_block_reference(x_nchw, params):
    """Pure-JAX f32 reference mirroring the PyTorch forward exactly."""
    B, C, H, W = x_nchw.shape
    S = H * W
    x_tok = jnp.transpose(x_nchw, (0, 2, 3, 1)).reshape(B, S, C)
    qkv = jnp.einsum("bsc,oc->bso", x_tok, params["w_qkv"]) + params["b_qkv"]
    q, k, v = qkv[..., :C], qkv[..., C:2 * C], qkv[..., 2 * C:]
    scores = jnp.einsum("bsc,btc->bst", q, k) * (C ** (-0.5))
    attn = jax.nn.softmax(scores, axis=-1)
    out = jnp.einsum("bst,btc->bsc", attn, v)
    out = jnp.einsum("bsc,oc->bso", out, params["w_out"]) + params["b_out"]
    out = out + x_tok
    return jnp.transpose(out.reshape(B, H, W, C), (0, 3, 1, 2))


if __name__ == "__main__":
    B, C, H, W = 2, 4, 16, 16
    key = jax.random.PRNGKey(0)
    kx, kp = jax.random.split(key)
    x = jax.random.normal(kx, (B, C, H, W), jnp.float32)
    params = init_params(kp, C)

    out = jax.block_until_ready(attention_block_pallas(x, params))
    ref = attention_block_reference(x, params)

    assert out.shape == (B, C, H, W)
    max_err = float(jnp.max(jnp.abs(out - ref)))
    # bf16 MXU operands / bf16 k,v,q storage => ~1e-2 tolerance (f32 accumulate).
    assert jnp.allclose(out, ref, atol=1e-2, rtol=1e-2), (
        f"mismatch vs reference (max abs err {max_err})")

    print("KERNEL_OK")
</pallas_src>

<mosaic_0001>
module attributes {stable_mosaic.version = 11 : i64} {
  func.func @_kv_proj_kernel(%arg0: i32, %arg1: i32, %arg2: memref<1x256x128xf32, #tpu.memory_space<vmem>>, %arg3: memref<128x256xbf16, #tpu.memory_space<vmem>>, %arg4: memref<1x256xf32, #tpu.memory_space<vmem>>, %arg5: memref<1x256x128xbf16, #tpu.memory_space<vmem>>, %arg6: memref<1x256x128xbf16, #tpu.memory_space<vmem>>) attributes {dimension_semantics = [#tpu.dimension_semantics<parallel>, #tpu.dimension_semantics<parallel>], iteration_bounds = array<i64: 2, 1>, scalar_prefetch = 0 : i64, scratch_operands = 0 : i64, tpu.core_type = #tpu.core_type<tc>, window_params = [{transform_indices = @transform_0, window_bounds = array<i64: 1, 256, 128>}, {pipeline_mode = #tpu.pipeline_mode<synchronous>, transform_indices = @transform_1, window_bounds = array<i64: 128, 256>}, {pipeline_mode = #tpu.pipeline_mode<synchronous>, transform_indices = @transform_2, window_bounds = array<i64: 1, 256>}, {transform_indices = @transform_3, window_bounds = array<i64: 1, 256, 128>}, {transform_indices = @transform_4, window_bounds = array<i64: 1, 256, 128>}]} {
    %c0 = arith.constant 0 : index
    %c0_0 = arith.constant 0 : index
    %c0_1 = arith.constant 0 : index
    %0 = vector.load %arg2[%c0, %c0_0, %c0_1] : memref<1x256x128xf32, #tpu.memory_space<vmem>>, vector<1x256x128xf32>
    %1 = vector.shape_cast %0 : vector<1x256x128xf32> to vector<256x128xf32>
    %2 = arith.truncf %1 : vector<256x128xf32> to vector<256x128xbf16>
    %c0_2 = arith.constant 0 : index
    %c0_3 = arith.constant 0 : index
    %3 = vector.load %arg3[%c0_2, %c0_3] : memref<128x256xbf16, #tpu.memory_space<vmem>>, vector<128x256xbf16>
    %cst = arith.constant dense<0.000000e+00> : vector<256x256xf32>
    %4 = tpu.matmul %2, %3, %cst {dimension_numbers = #tpu.dot_dimension_numbers<[1], [0], [0], [1], [0, 0, 1, 1], [], []>} : vector<256x128xbf16>, vector<128x256xbf16>, vector<256x256xf32> -> vector<256x256xf32>
    %c0_4 = arith.constant 0 : index
    %c0_5 = arith.constant 0 : index
    %5 = vector.load %arg4[%c0_4, %c0_5] : memref<1x256xf32, #tpu.memory_space<vmem>>, vector<1x256xf32>
    %6 = vector.broadcast %5 : vector<1x256xf32> to vector<256x256xf32>
    %7 = arith.addf %4, %6 : vector<256x256xf32>
    %8 = vector.extract_strided_slice %7 {offsets = [0, 0], sizes = [256, 128], strides = [1, 1]} : vector<256x256xf32> to vector<256x128xf32>
    %9 = arith.truncf %8 : vector<256x128xf32> to vector<256x128xbf16>
    %c0_6 = arith.constant 0 : index
    %c0_7 = arith.constant 0 : index
    %c0_8 = arith.constant 0 : index
    %10 = vector.load %arg5[%c0_6, %c0_7, %c0_8] : memref<1x256x128xbf16, #tpu.memory_space<vmem>>, vector<1x256x128xbf16>
    %11 = vector.shape_cast %10 : vector<1x256x128xbf16> to vector<256x128xbf16>
    %12 = vector.shape_cast %9 : vector<256x128xbf16> to vector<1x256x128xbf16>
    tpu.vector_store %arg5[%c0_6, %c0_7, %c0_8], %12 {strides = array<i32>} : memref<1x256x128xbf16, #tpu.memory_space<vmem>>, vector<1x256x128xbf16>,
    %13 = vector.extract_strided_slice %7 {offsets = [0, 128], sizes = [256, 128], strides = [1, 1]} : vector<256x256xf32> to vector<256x128xf32>
    %14 = arith.truncf %13 : vector<256x128xf32> to vector<256x128xbf16>
    %c0_9 = arith.constant 0 : index
    %c0_10 = arith.constant 0 : index
    %c0_11 = arith.constant 0 : index
    %15 = vector.load %arg6[%c0_9, %c0_10, %c0_11] : memref<1x256x128xbf16, #tpu.memory_space<vmem>>, vector<1x256x128xbf16>
    %16 = vector.shape_cast %15 : vector<1x256x128xbf16> to vector<256x128xbf16>
    %17 = vector.shape_cast %14 : vector<256x128xbf16> to vector<1x256x128xbf16>
    tpu.vector_store %arg6[%c0_9, %c0_10, %c0_11], %17 {strides = array<i32>} : memref<1x256x128xbf16, #tpu.memory_space<vmem>>, vector<1x256x128xbf16>,
    return
  }
  func.func @transform_0(%arg0: i32, %arg1: i32) -> (i32, i32, i32) {
    %c0_i32 = arith.constant 0 : i32
    %c0_i32_0 = arith.constant 0 : i32
    return %arg0, %arg1, %c0_i32 : i32, i32, i32
  }
  func.func @transform_1(%arg0: i32, %arg1: i32) -> (i32, i32) {
    %c0_i32 = arith.constant 0 : i32
    %c0_i32_0 = arith.constant 0 : i32
    %c0_i32_1 = arith.constant 0 : i32
    return %c0_i32, %c0_i32_0 : i32, i32
  }
  func.func @transform_2(%arg0: i32, %arg1: i32) -> (i32, i32) {
    %c0_i32 = arith.constant 0 : i32
    %c0_i32_0 = arith.constant 0 : i32
    %c0_i32_1 = arith.constant 0 : i32
    return %c0_i32, %c0_i32_0 : i32, i32
  }
  func.func @transform_3(%arg0: i32, %arg1: i32) -> (i32, i32, i32) {
    %c0_i32 = arith.constant 0 : i32
    %c0_i32_0 = arith.constant 0 : i32
    return %arg0, %arg1, %c0_i32 : i32, i32, i32
  }
  func.func @transform_4(%arg0: i32, %arg1: i32) -> (i32, i32, i32) {
    %c0_i32 = arith.constant 0 : i32
    %c0_i32_0 = arith.constant 0 : i32
    return %arg0, %arg1, %c0_i32 : i32, i32, i32
  }
}

</mosaic_0001>

<llo_original>
// kernel: tpu_custom_call.1
$region0: #{tpu_custom_call.1}
  #allocation0 [shape = 'u32[]', space=smem, size = 0x4, offset = 0x4, fixed_abs, tag = 'smem constant byte address 0x4 - core index']
  #allocation1 [shape = 'u32[144,128]{1,0:T(1,128)}', space=vmem, size = 0x12000, scoped, tag = 'internal scratch']
  %s0 = inlined_call_operand.hbm [shape: f32[2,256,128], index: 0, kind: input, shape index: {}]
  %s1 = inlined_call_operand.hbm [shape: bf16[128,256], index: 1, kind: input, shape index: {}]
  %s2 = inlined_call_operand.vmem [shape: f32[1,256], index: 2, kind: input, shape index: {}]
  %s3 = inlined_call_operand.hbm [shape: bf16[2,256,128], index: 3, kind: output, shape index: {0}]
  %s4 = inlined_call_operand.hbm [shape: bf16[2,256,128], index: 4, kind: output, shape index: {1}]
  %5 = xla_tuple %s3, %s4
  %s6 = sld [smem:[#allocation0]]
  $region61: #{tpu_custom_call.1} parent=0
    _
  %s8 = ssub.s32 1, %s6
  %s9 = scalar_select 0, %s8, %s6
  $region1: #{tpu_custom_call.1} parent=0
    #allocation2 [shape = 'u8[262144]{0}', space=vmem, size = 0x40000, scoped, tag = 'input window, operand 0']
    #allocation3 [shape = 's32[2]{0}', space=sflag, size = 0x8, scoped, tag = 'scoped memory for tpu_custom_call.1']
    #allocation4 [shape = 's32[2]{0}', space=sflag, size = 0x8, scoped, tag = 'scoped memory for tpu_custom_call.1']
    #allocation5 [shape = 'u8[65536]{0}', space=vmem, size = 0x10000, scoped, tag = 'input window, operand 1, single buffered']
    #allocation6 [shape = 's32[1]{0}', space=sflag, size = 0x4, scoped, tag = 'scoped memory for tpu_custom_call.1']
    #allocation7 [shape = 'u8[131072]{0}', space=vmem, size = 0x20000, scoped, tag = 'output window, operand 0']
    #allocation8 [shape = 'u8[131072]{0}', space=vmem, size = 0x20000, scoped, tag = 'output window, operand 1']
    #allocation9 [shape = 's32[2]{0}', space=sflag, size = 0x8, scoped, tag = 'scoped memory for tpu_custom_call.1']
    %10 = vsyncpa [#allocation3], 0
    %s11 = scalar_lea.sflag [#allocation3], 1
    %12 = vsyncpa %s11, 0
    %13 = vsyncpa [#allocation6], 0
    %14 = vsyncpa [#allocation4], 0
    %s15 = scalar_lea.sflag [#allocation4], 1
    %16 = vsyncpa %s15, 0
    %17 = vsyncpa [#allocation9], 0
    %s18 = scalar_lea.sflag [#allocation9], 1
    %19 = vsyncpa %s18, 0
    loop: start=0, step=1, limit=4
    $region2: #{tpu_custom_call.1} parent=1 // loop_pre_header
      _
    $region3: #{tpu_custom_call.1} parent=1 // loop_header
      %s21 = sphi 0, %s25
      %p22 = scmp.ge.s32.totalorder %s21, 4
      %s28 = sphi 0, %s40
      %s29 = sphi 0, %s36
      %s30 = sphi 0, %s28
      %s31 = sphi 0, %s29
      %s32 = sphi 0, %s30
      %s33 = sphi 0, %s31
      %s45 = sphi 0, %s47
      %s48 = sphi 0, %s45
      %s49 = sphi 0, %s48
      %s65 = sphi 0, %s49
      %s69 = sphi 0, %s69
      %s71 = sphi 0, %s69
      %s72 = sphi 0, %s71
      %s86 = sphi 0, %s72
      %s90 = sphi 0, %s90
      %s92 = sphi 0, %s90
      %s93 = sphi 0, %s92
      %s107 = sphi 0, %s93
      %s115 = sphi 0, %s117
      %s118 = sphi 0, %s115
      %s119 = sphi 0, %s118
      %s135 = sphi 0, %s119
      %s143 = sphi 0, %s145
      %s146 = sphi 0, %s143
      %s147 = sphi 0, %s146
      %s163 = sphi 0, %s147
    $region4: #{tpu_custom_call.1} parent=1 // loop_header_branch
      %24 = sbr.rel (%p22) target = $region8
    $region5: #{tpu_custom_call.1} parent=1 // loop_body
      %s26 = ssub.s32 %s21, 1
      %s27 = ssub.s32 %s21, 2
      %s34 = sadd.s32 1, %s29
      %p35 = scmp.ge.s32.totalorder %s34, 1
      %s36 = scalar_select %p35, 0, %s34
      %s37 = sadd.s32 1, %s28
      %s38 = scalar_select %p35, %s37, %s28
      %p39 = scmp.ge.s32.totalorder %s38, 2
      %s40 = scalar_select %p39, 0, %s38
      %s41 = ssub.s32 %s28, %s40
      %s42 = ssub.s32 %s29, %s36
      %s43 = sor.u32 %s41, %s42
      %p44 = scmp.eq.s32.totalorder %s43, 0
      %s46 = sadd.s32 %s45, 1
      %s47 = scalar_select %p44, %s45, %s46
      %p50 = pneg %p44
      %p51 = scmp.eq.s32.totalorder %s21, 1
      %p52 = por %p50, %p51
      %p53 = scmp.ne.s32.totalorder %s45, %s48
      %p54 = scmp.eq.s32.totalorder %s21, 0
      %p55 = por %p53, %p54
      %p56 = scmp.ne.s32.totalorder %s45, %s48
      %p57 = scmp.eq.s32.totalorder %s26, 1
      %p58 = por %p56, %p57
      %p59 = scmp.ne.s32.totalorder %s48, %s49
      %p60 = scmp.eq.s32.totalorder %s26, 0
      %p61 = por %p59, %p60
      %p62 = scmp.ne.s32.totalorder %s48, %s49
      %p63 = scmp.eq.s32.totalorder %s27, 1
      %p64 = por %p62, %p63
      %p66 = scmp.ne.s32.totalorder %s49, %s65
      %p67 = scmp.eq.s32.totalorder %s27, 0
      %p68 = por %p66, %p67
      %s70 = sadd.s32 %s69, 1
      %p73 = scmp.eq.s32.totalorder %s21, 1
      %p74 = scmp.ne.s32.totalorder %s69, %s71
      %p75 = scmp.eq.s32.totalorder %s21, 0
      %p76 = por %p74, %p75
      %p77 = scmp.ne.s32.totalorder %s69, %s71
      %p78 = scmp.eq.s32.totalorder %s26, 1
      %p79 = por %p77, %p78
      %p80 = scmp.ne.s32.totalorder %s71, %s72
      %p81 = scmp.eq.s32.totalorder %s26, 0
      %p82 = por %p80, %p81
      %p83 = scmp.ne.s32.totalorder %s71, %s72
      %p84 = scmp.eq.s32.totalorder %s27, 1
      %p85 = por %p83, %p84
      %p87 = scmp.ne.s32.totalorder %s72, %s86
      %p88 = scmp.eq.s32.totalorder %s27, 0
      %p89 = por %p87, %p88
      %s91 = sadd.s32 %s90, 1
      %p94 = scmp.eq.s32.totalorder %s21, 1
      %p95 = scmp.ne.s32.totalorder %s90, %s92
      %p96 = scmp.eq.s32.totalorder %s21, 0
      %p97 = por %p95, %p96
      %p98 = scmp.ne.s32.totalorder %s90, %s92
      %p99 = scmp.eq.s32.totalorder %s26, 1
      %p100 = por %p98, %p99
      %p101 = scmp.ne.s32.totalorder %s92, %s93
      %p102 = scmp.eq.s32.totalorder %s26, 0
      %p103 = por %p101, %p102
      %p104 = scmp.ne.s32.totalorder %s92, %s93
      %p105 = scmp.eq.s32.totalorder %s27, 1
      %p106 = por %p104, %p105
      %p108 = scmp.ne.s32.totalorder %s93, %s107
      %p109 = scmp.eq.s32.totalorder %s27, 0
      %p110 = por %p108, %p109
      %s111 = ssub.s32 %s28, %s40
      %s112 = ssub.s32 %s29, %s36
      %s113 = sor.u32 %s111, %s112
      %p114 = scmp.eq.s32.totalorder %s113, 0
      %s116 = sadd.s32 %s115, 1
      %s117 = scalar_select %p114, %s115, %s116
      %p120 = pneg %p114
      %p121 = scmp.eq.s32.totalorder %s21, 1
      %p122 = por %p120, %p121
      %p123 = scmp.ne.s32.totalorder %s115, %s118
      %p124 = scmp.eq.s32.totalorder %s21, 0
      %p125 = por %p123, %p124
      %p126 = scmp.ne.s32.totalorder %s115, %s118
      %p127 = scmp.eq.s32.totalorder %s26, 1
      %p128 = por %p126, %p127
      %p129 = scmp.ne.s32.totalorder %s118, %s119
      %p130 = scmp.eq.s32.totalorder %s26, 0
      %p131 = por %p129, %p130
      %p132 = scmp.ne.s32.totalorder %s118, %s119
      %p133 = scmp.eq.s32.totalorder %s27, 1
      %p134 = por %p132, %p133
      %p136 = scmp.ne.s32.totalorder %s119, %s135
      %p137 = scmp.eq.s32.totalorder %s27, 0
      %p138 = por %p136, %p137
      %s139 = ssub.s32 %s28, %s40
      %s140 = ssub.s32 %s29, %s36
      %s141 = sor.u32 %s139, %s140
      %p142 = scmp.eq.s32.totalorder %s141, 0
      %s144 = sadd.s32 %s143, 1
      %s145 = scalar_select %p142, %s143, %s144
      %p148 = pneg %p142
      %p149 = scmp.eq.s32.totalorder %s21, 1
      %p150 = por %p148, %p149
      %p151 = scmp.ne.s32.totalorder %s143, %s146
      %p152 = scmp.eq.s32.totalorder %s21, 0
      %p153 = por %p151, %p152
      %p154 = scmp.ne.s32.totalorder %s143, %s146
      %p155 = scmp.eq.s32.totalorder %s26, 1
      %p156 = por %p154, %p155
      %p157 = scmp.ne.s32.totalorder %s146, %s147
      %p158 = scmp.eq.s32.totalorder %s26, 0
      %p159 = por %p157, %p158
      %p160 = scmp.ne.s32.totalorder %s146, %s147
      %p161 = scmp.eq.s32.totalorder %s27, 1
      %p162 = por %p160, %p161
      %p164 = scmp.ne.s32.totalorder %s147, %s163
      %p165 = scmp.eq.s32.totalorder %s27, 0
      %p166 = por %p164, %p165
      %p167 = scmp.le.s32.totalorder 1, %s21
      %p168 = scmp.lt.s32.totalorder %s21, 3
      %p169 = pnand %p167, %p168
      %p170 = pneg %p169
      // Predicated region
      $region9: #{tpu_custom_call.1} parent=5 // pred_check
        _
      $region10: #{tpu_custom_call.1} parent=5 // pred_check_branch
        %172 = sbr.rel (%p169) target = $region12
      $region11: #{tpu_custom_call.1} parent=5 // pred_region
        %s173 = ssub.s32 %s21, 1
        // Predicated region
        $region13: #{tpu_custom_call.1} parent=11 // pred_check
          %p174 = pneg %p82
        $region14: #{tpu_custom_call.1} parent=11 // pred_check_branch
          %176 = sbr.rel (%p174) target = $region16
        $region15: #{tpu_custom_call.1} parent=11 // pred_region
          %s178 = ssub.s32 2048, 2048
          %179 = vsyncadd [#allocation6], %s178
          %s180 = sshll.u32 [#allocation5], 4
          %s181 = int_to_ptr.vmem [resolvable:$true] %s180
          %186 = dma.hbm_to_vmem [thread:$0]  %s1, 2048, %s181, [#allocation6], 128, 128, 8
        $region16: #{tpu_custom_call.1} parent=11 // pred_fallthru
          _
        // Predicated region
        $region17: #{tpu_custom_call.1} parent=11 // pred_check
          %p187 = pneg %p103
        $region18: #{tpu_custom_call.1} parent=11 // pred_check_branch
          %189 = sbr.rel (%p187) target = $region20
        $region19: #{tpu_custom_call.1} parent=11 // pred_region
          _
        $region20: #{tpu_custom_call.1} parent=11 // pred_fallthru
          _
      $region12: #{tpu_custom_call.1} parent=5 // pred_fallthru
        _
      %p190 = scmp.lt.s32.totalorder %s21, 2
      // Predicated region
      $region21: #{tpu_custom_call.1} parent=5 // pred_check
        %p191 = pneg %p190
      $region22: #{tpu_custom_call.1} parent=5 // pred_check_branch
        %193 = sbr.rel (%p191) target = $region24
      $region23: #{tpu_custom_call.1} parent=5 // pred_region
        // Predicated region
        $region25: #{tpu_custom_call.1} parent=23 // pred_check
          %p194 = pneg %p55
        $region26: #{tpu_custom_call.1} parent=23 // pred_check_branch
          %196 = sbr.rel (%p194) target = $region28
        $region27: #{tpu_custom_call.1} parent=23 // pred_region
          %s197 = sand.u32 %s45, 1
          %s198 = scalar_lea.sflag [#allocation3], %s197
          %s199 = sand.u32 %s45, 1
          %s200 = smul.addr %s199, 256
          %s201 = scalar_lea.vmem [#allocation2], %s200
          %s202 = smul.u32 32, %s29
          %s204 = ssub.s32 4096, 4096
          %205 = vsyncadd %s198, %s204
          %s206 = smul.addr %s28, 32
          %s207 = sadd.s32 %s202, %s206
          %s208 = smul.addr %s207, 128
          %s209 = scalar_lea.hbm %s0, %s208
          %s210 = sshll.u32 %s201, 4
          %s211 = int_to_ptr.vmem [resolvable:$true] %s210
          %216 = dma.hbm_to_vmem [thread:$0]  %s209, 4096, %s211, %s198, 128, 128, 8
        $region28: #{tpu_custom_call.1} parent=23 // pred_fallthru
          _
      $region24: #{tpu_custom_call.1} parent=5 // pred_fallthru
        _
      %p217 = scmp.le.s32.totalorder 1, %s21
      %p218 = scmp.lt.s32.totalorder %s21, 3
      %p219 = pnand %p217, %p218
      %p220 = pneg %p219
      // Predicated region
      $region29: #{tpu_custom_call.1} parent=5 // pred_check
        _
      $region30: #{tpu_custom_call.1} parent=5 // pred_check_branch
        %222 = sbr.rel (%p219) target = $region32
      $region31: #{tpu_custom_call.1} parent=5 // pred_region
        %s223 = ssub.s32 %s21, 1
        %s224 = sand.u32 %s48, 1
        %s225 = scalar_lea.sflag [#allocation3], %s224
        %s226 = sand.u32 %s48, 1
        %s227 = smul.addr %s226, 256
        %s228 = scalar_lea.vmem [#allocation2], %s227
        // Predicated region
        $region33: #{tpu_custom_call.1} parent=31 // pred_check
          %p229 = pneg %p61
        $region34: #{tpu_custom_call.1} parent=31 // pred_check_branch
          %231 = sbr.rel (%p229) target = $region36
        $region35: #{tpu_custom_call.1} parent=31 // pred_region
          %232 = dma.done %s225, 4096
        $region36: #{tpu_custom_call.1} parent=31 // pred_fallthru
          _
        // Predicated region
        $region37: #{tpu_custom_call.1} parent=31 // pred_check
          %p233 = pneg %p82
        $region38: #{tpu_custom_call.1} parent=31 // pred_check_branch
          %235 = sbr.rel (%p233) target = $region40
        $region39: #{tpu_custom_call.1} parent=31 // pred_region
          %236 = dma.done [#allocation6], 2048
        $region40: #{tpu_custom_call.1} parent=31 // pred_fallthru
          _
        %s237 = sand.u32 %s48, 1
        %s238 = scalar_lea.sflag [#allocation3], %s237
        %s239 = sand.u32 %s48, 1
        %s240 = smul.addr %s239, 256
        %s241 = scalar_lea.vmem [#allocation2], %s240
        %p242 = pneg %p61
        %p243 = pneg %p58
        %p244 = pneg %p82
        %p245 = pneg %p79
        %p246 = pneg %p103
        %p247 = pneg %p100
        %p248 = pneg %p131
        %p249 = pneg %p128
        %s250 = sand.u32 %s118, 1
        %s251 = scalar_lea.sflag [#allocation4], %s250
        %s252 = sand.u32 %s118, 1
        %s253 = smul.addr %s252, 128
        %s254 = scalar_lea.vmem [#allocation7], %s253
        %p255 = pneg %p159
        %p256 = pneg %p156
        %s257 = sand.u32 %s146, 1
        %s258 = scalar_lea.sflag [#allocation9], %s257
        %s259 = sand.u32 %s146, 1
        %s260 = smul.addr %s259, 128
        %s261 = scalar_lea.vmem [#allocation8], %s260
        %s262 = smul.u32 32, %s31
        %s263 = smul.u32 32, %s31
        %s264 = smul.u32 32, %s31
        %v266 = vld [vmem:[%s228] sm:$0xff]
        %v267 = vld [vmem:[%s228 + $0x8] sm:$0xff]
        %v268 = vld [vmem:[%s228 + $0x10] sm:$0xff]
        %v269 = vld [vmem:[%s228 + $0x18] sm:$0xff]
        %v270 = vld [vmem:[%s228 + $0x20] sm:$0xff]
        %v271 = vld [vmem:[%s228 + $0x28] sm:$0xff]
        %v272 = vld [vmem:[%s228 + $0x30] sm:$0xff]
        %v273 = vld [vmem:[%s228 + $0x38] sm:$0xff]
        %v274 = vld [vmem:[%s228 + $0x40] sm:$0xff]
        %v275 = vld [vmem:[%s228 + $0x48] sm:$0xff]
        %v276 = vld [vmem:[%s228 + $0x50] sm:$0xff]
        %v277 = vld [vmem:[%s228 + $0x58] sm:$0xff]
        %v278 = vld [vmem:[%s228 + $0x60] sm:$0xff]
        %v279 = vld [vmem:[%s228 + $0x68] sm:$0xff]
        %v280 = vld [vmem:[%s228 + $0x70] sm:$0xff]
        %v281 = vld [vmem:[%s228 + $0x78] sm:$0xff]
        %v282 = vld [vmem:[%s228 + $0x80] sm:$0xff]
        %v283 = vld [vmem:[%s228 + $0x88] sm:$0xff]
        %v284 = vld [vmem:[%s228 + $0x90] sm:$0xff]
        %v285 = vld [vmem:[%s228 + $0x98] sm:$0xff]
        %v286 = vld [vmem:[%s228 + $0xa0] sm:$0xff]
        %v287 = vld [vmem:[%s228 + $0xa8] sm:$0xff]
        %v288 = vld [vmem:[%s228 + $0xb0] sm:$0xff]
        %v289 = vld [vmem:[%s228 + $0xb8] sm:$0xff]
        %v290 = vld [vmem:[%s228 + $0xc0] sm:$0xff]
        %v291 = vld [vmem:[%s228 + $0xc8] sm:$0xff]
        %v292 = vld [vmem:[%s228 + $0xd0] sm:$0xff]
        %v293 = vld [vmem:[%s228 + $0xd8] sm:$0xff]
        %v294 = vld [vmem:[%s228 + $0xe0] sm:$0xff]
        %v295 = vld [vmem:[%s228 + $0xe8] sm:$0xff]
        %v296 = vld [vmem:[%s228 + $0xf0] sm:$0xff]
        %v297 = vld [vmem:[%s228 + $0xf8] sm:$0xff]
        %v298 = vpack.c.bf16 %v267, %v266
        %v299 = vpack.c.bf16 %v269, %v268
        %v300 = vpack.c.bf16 %v271, %v270
        %v301 = vpack.c.bf16 %v273, %v272
        %v302 = vpack.c.bf16 %v275, %v274
        %v303 = vpack.c.bf16 %v277, %v276
        %v304 = vpack.c.bf16 %v279, %v278
        %v305 = vpack.c.bf16 %v281, %v280
        %v306 = vpack.c.bf16 %v283, %v282
        %v307 = vpack.c.bf16 %v285, %v284
        %v308 = vpack.c.bf16 %v287, %v286
        %v309 = vpack.c.bf16 %v289, %v288
        %v310 = vpack.c.bf16 %v291, %v290
        %v311 = vpack.c.bf16 %v293, %v292
        %v312 = vpack.c.bf16 %v295, %v294
        %v313 = vpack.c.bf16 %v297, %v296
        %v314 = vld [vmem:[#allocation5] sm:$0xff]
        %v315 = vld [vmem:[#allocation5 + $0x8] sm:$0xff]
        %v316 = vld [vmem:[#allocation5 + $0x10] sm:$0xff]
        %v317 = vld [vmem:[#allocation5 + $0x18] sm:$0xff]
        %v318 = vld [vmem:[#allocation5 + $0x20] sm:$0xff]
        %v319 = vld [vmem:[#allocation5 + $0x28] sm:$0xff]
        %v320 = vld [vmem:[#allocation5 + $0x30] sm:$0xff]
        %v321 = vld [vmem:[#allocation5 + $0x38] sm:$0xff]
        %v322 = vld [vmem:[#allocation5 + $0x40] sm:$0xff]
        %v323 = vld [vmem:[#allocation5 + $0x48] sm:$0xff]
        %v324 = vld [vmem:[#allocation5 + $0x50] sm:$0xff]
        %v325 = vld [vmem:[#allocation5 + $0x58] sm:$0xff]
        %v326 = vld [vmem:[#allocation5 + $0x60] sm:$0xff]
        %v327 = vld [vmem:[#allocation5 + $0x68] sm:$0xff]
        %v328 = vld [vmem:[#allocation5 + $0x70] sm:$0xff]
        %v329 = vld [vmem:[#allocation5 + $0x78] sm:$0xff]
        %v330 = vld [vmem:[%s2] sm:$0x3]
        %v332 = vlaneseq
        %v333 = vshrl.u32 %v332, 7
        %v334 = vsub.s32 0, %v333
        %v335 = vrot.slane %v330, %v334
        %v336 = vlaneseq
        %v337 = vshrl.u32 %v336, 7
        %v338 = vsub.s32 1, %v337
        %v339 = vrot.slane %v330, %v338
        %v358 = vunpack.c.l.b16 %v314
        %v359 = vunpack.c.h.b16 %v314
        %v360 = vunpack.c.l.b16 %v315
        %v361 = vunpack.c.h.b16 %v315
        %v362 = vunpack.c.l.b16 %v316
        %v363 = vunpack.c.h.b16 %v316
        %v364 = vunpack.c.l.b16 %v317
        %v365 = vunpack.c.h.b16 %v317
        %v366 = vunpack.c.l.b16 %v318
        %v367 = vunpack.c.h.b16 %v318
        %v368 = vunpack.c.l.b16 %v319
        %v369 = vunpack.c.h.b16 %v319
        %v370 = vunpack.c.l.b16 %v320
        %v371 = vunpack.c.h.b16 %v320
        %v372 = vunpack.c.l.b16 %v321
        %v373 = vunpack.c.h.b16 %v321
        %v374 = vunpack.c.l.b16 %v322
        %v375 = vunpack.c.h.b16 %v322
        %v376 = vunpack.c.l.b16 %v323
        %v377 = vunpack.c.h.b16 %v323
        %v378 = vunpack.c.l.b16 %v324
        %v379 = vunpack.c.h.b16 %v324
        %v380 = vunpack.c.l.b16 %v325
        %v381 = vunpack.c.h.b16 %v325
        %v382 = vunpack.c.l.b16 %v326
        %v383 = vunpack.c.h.b16 %v326
        %v384 = vunpack.c.l.b16 %v327
        %v385 = vunpack.c.h.b16 %v327
        %v386 = vunpack.c.l.b16 %v328
        %v387 = vunpack.c.h.b16 %v328
        %v388 = vunpack.c.l.b16 %v329
        %v389 = vunpack.c.h.b16 %v329
        %v390 = vpack.c.b16 %v360, %v358
        %v391 = vpack.c.b16 %v361, %v359
        %v392 = vpack.c.b16 %v364, %v362
        %v393 = vpack.c.b16 %v365, %v363
        %v394 = vpack.c.b16 %v368, %v366
        %v395 = vpack.c.b16 %v369, %v367
        %v396 = vpack.c.b16 %v372, %v370
        %v397 = vpack.c.b16 %v373, %v371
        %v398 = vpack.c.b16 %v376, %v374
        %v399 = vpack.c.b16 %v377, %v375
        %v400 = vpack.c.b16 %v380, %v378
        %v401 = vpack.c.b16 %v381, %v379
        %v402 = vpack.c.b16 %v384, %v382
        %v403 = vpack.c.b16 %v385, %v383
        %v404 = vpack.c.b16 %v388, %v386
        %v405 = vpack.c.b16 %v389, %v387
        %422 = vmatprep.subr.bf16.mxu0 %v405
        %423 = vmatpush1.bf16.msra.mxu0 %v404
        %424 = vmatprep.subr.bf16.mxu0 %v403
        %425 = vmatpush1.bf16.msra.mxu0 %v402
        %426 = vmatprep.subr.bf16.mxu0 %v401
        %427 = vmatpush1.bf16.msra.mxu0 %v400
        %428 = vmatprep.subr.bf16.mxu0 %v399
        %429 = vmatpush1.bf16.msra.mxu0 %v398
        %430 = vmatprep.subr.bf16.mxu0 %v397
        %431 = vmatpush1.bf16.msra.mxu0 %v396
        %432 = vmatprep.subr.bf16.mxu0 %v395
        %433 = vmatpush1.bf16.msra.mxu0 %v394
        %434 = vmatprep.subr.bf16.mxu0 %v393
        %435 = vmatpush1.bf16.msra.mxu0 %v392
        %436 = vmatprep.subr.bf16.mxu0 %v391
        %437 = vmatpush1.bf16.msra.mxu0 %v390
        %438 = vmatprep.subr.bf16.mxu0 0
        %439 = vmatpush2.bf16.msra.mxu0 0
        %440 = vmatprep.subr.bf16.mxu0 0
        %441 = vmatpush2.bf16.msra.mxu0 0
        %442 = vmatprep.subr.bf16.mxu0 0
        %443 = vmatpush2.bf16.msra.mxu0 0
        %444 = vmatprep.subr.bf16.mxu0 0
        %445 = vmatpush2.bf16.msra.mxu0 0
        %446 = vmatprep.subr.bf16.mxu0 0
        %447 = vmatpush2.bf16.msra.mxu0 0
        %448 = vmatprep.subr.bf16.mxu0 0
        %449 = vmatpush2.bf16.msra.mxu0 0
        %450 = vmatprep.subr.bf16.mxu0 0
        %451 = vmatpush2.bf16.msra.mxu0 0
        %452 = vmatprep.subr.bf16.mxu0 0
        %453 = vmatpush2.bf16.msra.mxu0 0
        %454 = vmatprep.mubr.bf16.mxu0 0
        %455 = vmatmul.mubr.bf16.gmra.mxu0 %v298
        %v456 = vpop.f32.mrf.mxu0
        %v457 = vadd.f32 %v335, %v456
        %v458 = vpop.f32.mrf.mxu0
        %v459 = vadd.f32 %v339, %v458
        %v460 = vpop.f32.mrf.mxu0
        %v461 = vadd.f32 %v335, %v460
        %v462 = vpop.f32.mrf.mxu0
        %v463 = vadd.f32 %v339, %v462
        %464 = vmatprep.mubr.bf16.mxu0 0
        %465 = vmatmul.mubr.bf16.gmra.mxu0 %v299
        %v466 = vpop.f32.mrf.mxu0
        %v467 = vadd.f32 %v335, %v466
        %v468 = vpop.f32.mrf.mxu0
        %v469 = vadd.f32 %v339, %v468
        %v470 = vpop.f32.mrf.mxu0
        %v471 = vadd.f32 %v335, %v470
        %v472 = vpop.f32.mrf.mxu0
        %v473 = vadd.f32 %v339, %v472
        %474 = vmatprep.mubr.bf16.mxu0 0
        %475 = vmatmul.mubr.bf16.gmra.mxu0 %v300
        %v476 = vpop.f32.mrf.mxu0
        %v477 = vadd.f32 %v335, %v476
        %v478 = vpop.f32.mrf.mxu0
        %v479 = vadd.f32 %v339, %v478
        %v480 = vpop.f32.mrf.mxu0
        %v481 = vadd.f32 %v335, %v480
        %v482 = vpop.f32.mrf.mxu0
        %v483 = vadd.f32 %v339, %v482
        %484 = vmatprep.mubr.bf16.mxu0 0
        %485 = vmatmul.mubr.bf16.gmra.mxu0 %v301
        %v486 = vpop.f32.mrf.mxu0
        %v487 = vadd.f32 %v335, %v486
        %v488 = vpop.f32.mrf.mxu0
        %v489 = vadd.f32 %v339, %v488
        %v490 = vpop.f32.mrf.mxu0
        %v491 = vadd.f32 %v335, %v490
        %v492 = vpop.f32.mrf.mxu0
        %v493 = vadd.f32 %v339, %v492
        %494 = vmatprep.mubr.bf16.mxu0 0
        %495 = vmatmul.mubr.bf16.gmra.mxu0 %v302
        %v496 = vpop.f32.mrf.mxu0
        %v497 = vadd.f32 %v335, %v496
        %v498 = vpop.f32.mrf.mxu0
        %v499 = vadd.f32 %v339, %v498
        %v500 = vpop.f32.mrf.mxu0
        %v501 = vadd.f32 %v335, %v500
        %v502 = vpop.f32.mrf.mxu0
        %v503 = vadd.f32 %v339, %v502
        %504 = vmatprep.mubr.bf16.mxu0 0
        %505 = vmatmul.mubr.bf16.gmra.mxu0 %v303
        %v506 = vpop.f32.mrf.mxu0
        %v507 = vadd.f32 %v335, %v506
        %v508 = vpop.f32.mrf.mxu0
        %v509 = vadd.f32 %v339, %v508
        %v510 = vpop.f32.mrf.mxu0
        %v511 = vadd.f32 %v335, %v510
        %v512 = vpop.f32.mrf.mxu0
        %v513 = vadd.f32 %v339, %v512
        %514 = vmatprep.mubr.bf16.mxu0 0
        %515 = vmatmul.mubr.bf16.gmra.mxu0 %v304
        %v516 = vpop.f32.mrf.mxu0
        %v517 = vadd.f32 %v335, %v516
        %v518 = vpop.f32.mrf.mxu0
        %v519 = vadd.f32 %v339, %v518
        %v520 = vpop.f32.mrf.mxu0
        %v521 = vadd.f32 %v335, %v520
        %v522 = vpop.f32.mrf.mxu0
        %v523 = vadd.f32 %v339, %v522
        %524 = vmatprep.mubr.bf16.mxu0 0
        %525 = vmatmul.mubr.bf16.gmra.mxu0 %v305
        %v526 = vpop.f32.mrf.mxu0
        %v527 = vadd.f32 %v335, %v526
        %v528 = vpop.f32.mrf.mxu0
        %v529 = vadd.f32 %v339, %v528
        %v530 = vpop.f32.mrf.mxu0
        %v531 = vadd.f32 %v335, %v530
        %v532 = vpop.f32.mrf.mxu0
        %v533 = vadd.f32 %v339, %v532
        %534 = vmatprep.mubr.bf16.mxu0 0
        %535 = vmatmul.mubr.bf16.gmra.mxu0 %v306
        %v536 = vpop.f32.mrf.mxu0
        %v537 = vadd.f32 %v335, %v536
        %v538 = vpop.f32.mrf.mxu0
        %v539 = vadd.f32 %v339, %v538
        %v540 = vpop.f32.mrf.mxu0
        %v541 = vadd.f32 %v335, %v540
        %v542 = vpop.f32.mrf.mxu0
        %v543 = vadd.f32 %v339, %v542
        %544 = vmatprep.mubr.bf16.mxu0 0
        %545 = vmatmul.mubr.bf16.gmra.mxu0 %v307
        %v546 = vpop.f32.mrf.mxu0
        %v547 = vadd.f32 %v335, %v546
        %v548 = vpop.f32.mrf.mxu0
        %v549 = vadd.f32 %v339, %v548
        %v550 = vpop.f32.mrf.mxu0
        %v551 = vadd.f32 %v335, %v550
        %v552 = vpop.f32.mrf.mxu0
        %v553 = vadd.f32 %v339, %v552
        %554 = vmatprep.mubr.bf16.mxu0 0
        %555 = vmatmul.mubr.bf16.gmra.mxu0 %v308
        %v556 = vpop.f32.mrf.mxu0
        %v557 = vadd.f32 %v335, %v556
        %v558 = vpop.f32.mrf.mxu0
        %v559 = vadd.f32 %v339, %v558
        %v560 = vpop.f32.mrf.mxu0
        %v561 = vadd.f32 %v335, %v560
        %v562 = vpop.f32.mrf.mxu0
        %v563 = vadd.f32 %v339, %v562
        %564 = vmatprep.mubr.bf16.mxu0 0
        %565 = vmatmul.mubr.bf16.gmra.mxu0 %v309
        %v566 = vpop.f32.mrf.mxu0
        %v567 = vadd.f32 %v335, %v566
        %v568 = vpop.f32.mrf.mxu0
        %v569 = vadd.f32 %v339, %v568
        %v570 = vpop.f32.mrf.mxu0
        %v571 = vadd.f32 %v335, %v570
        %v572 = vpop.f32.mrf.mxu0
        %v573 = vadd.f32 %v339, %v572
        %574 = vmatprep.mubr.bf16.mxu0 0
        %575 = vmatmul.mubr.bf16.gmra.mxu0 %v310
        %v576 = vpop.f32.mrf.mxu0
        %v577 = vadd.f32 %v335, %v576
        %v578 = vpop.f32.mrf.mxu0
        %v579 = vadd.f32 %v339, %v578
        %v580 = vpop.f32.mrf.mxu0
        %v581 = vadd.f32 %v335, %v580
        %v582 = vpop.f32.mrf.mxu0
        %v583 = vadd.f32 %v339, %v582
        %584 = vmatprep.mubr.bf16.mxu0 0
        %585 = vmatmul.mubr.bf16.gmra.mxu0 %v311
        %v586 = vpop.f32.mrf.mxu0
        %v587 = vadd.f32 %v335, %v586
        %v588 = vpop.f32.mrf.mxu0
        %v589 = vadd.f32 %v339, %v588
        %v590 = vpop.f32.mrf.mxu0
        %v591 = vadd.f32 %v335, %v590
        %v592 = vpop.f32.mrf.mxu0
        %v593 = vadd.f32 %v339, %v592
        %594 = vmatprep.mubr.bf16.mxu0 0
        %595 = vmatmul.mubr.bf16.gmra.mxu0 %v312
        %v596 = vpop.f32.mrf.mxu0
        %v597 = vadd.f32 %v335, %v596
        %v598 = vpop.f32.mrf.mxu0
        %v599 = vadd.f32 %v339, %v598
        %v600 = vpop.f32.mrf.mxu0
        %v601 = vadd.f32 %v335, %v600
        %v602 = vpop.f32.mrf.mxu0
        %v603 = vadd.f32 %v339, %v602
        %604 = vmatprep.mubr.bf16.mxu0 0
        %605 = vmatmul.mubr.bf16.gmra.mxu0 %v313
        %v606 = vpop.f32.mrf.mxu0
        %v607 = vadd.f32 %v335, %v606
        %v608 = vpop.f32.mrf.mxu0
        %v609 = vadd.f32 %v339, %v608
        %v610 = vpop.f32.mrf.mxu0
        %v611 = vadd.f32 %v335, %v610
        %v612 = vpop.f32.mrf.mxu0
        %v613 = vadd.f32 %v339, %v612
        %614 = vdwg.mxu0
        %v615 = vpack.c.bf16 %v461, %v457
        %v616 = vpack.c.bf16 %v471, %v467
        %v617 = vpack.c.bf16 %v481, %v477
        %v618 = vpack.c.bf16 %v491, %v487
        %v619 = vpack.c.bf16 %v501, %v497
        %v620 = vpack.c.bf16 %v511, %v507
        %v621 = vpack.c.bf16 %v521, %v517
        %v622 = vpack.c.bf16 %v531, %v527
        %v623 = vpack.c.bf16 %v541, %v537
        %v624 = vpack.c.bf16 %v551, %v547
        %v625 = vpack.c.bf16 %v561, %v557
        %v626 = vpack.c.bf16 %v571, %v567
        %v627 = vpack.c.bf16 %v581, %v577
        %v628 = vpack.c.bf16 %v591, %v587
        %v629 = vpack.c.bf16 %v601, %v597
        %v630 = vpack.c.bf16 %v611, %v607
        %v647 = vunpack.c.l.b16 %v615
        %v648 = vunpack.c.h.b16 %v615
        %v649 = vunpack.c.l.b16 %v616
        %v650 = vunpack.c.h.b16 %v616
        %v651 = vunpack.c.l.b16 %v617
        %v652 = vunpack.c.h.b16 %v617
        %v653 = vunpack.c.l.b16 %v618
        %v654 = vunpack.c.h.b16 %v618
        %v655 = vunpack.c.l.b16 %v619
        %v656 = vunpack.c.h.b16 %v619
        %v657 = vunpack.c.l.b16 %v620
        %v658 = vunpack.c.h.b16 %v620
        %v659 = vunpack.c.l.b16 %v621
        %v660 = vunpack.c.h.b16 %v621
        %v661 = vunpack.c.l.b16 %v622
        %v662 = vunpack.c.h.b16 %v622
        %v663 = vunpack.c.l.b16 %v623
        %v664 = vunpack.c.h.b16 %v623
        %v665 = vunpack.c.l.b16 %v624
        %v666 = vunpack.c.h.b16 %v624
        %v667 = vunpack.c.l.b16 %v625
        %v668 = vunpack.c.h.b16 %v625
        %v669 = vunpack.c.l.b16 %v626
        %v670 = vunpack.c.h.b16 %v626
        %v671 = vunpack.c.l.b16 %v627
        %v672 = vunpack.c.h.b16 %v627
        %v673 = vunpack.c.l.b16 %v628
        %v674 = vunpack.c.h.b16 %v628
        %v675 = vunpack.c.l.b16 %v629
        %v676 = vunpack.c.h.b16 %v629
        %v677 = vunpack.c.l.b16 %v630
        %v678 = vunpack.c.h.b16 %v630
        %v679 = vpack.c.b16 %v647, %v647
        %v680 = vpack.c.b16 %v648, %v648
        %v681 = vpack.c.b16 %v649, %v649
        %v682 = vpack.c.b16 %v650, %v650
        %v683 = vpack.c.b16 %v651, %v651
        %v684 = vpack.c.b16 %v652, %v652
        %v685 = vpack.c.b16 %v653, %v653
        %v686 = vpack.c.b16 %v654, %v654
        %v687 = vpack.c.b16 %v655, %v655
        %v688 = vpack.c.b16 %v656, %v656
        %v689 = vpack.c.b16 %v657, %v657
        %v690 = vpack.c.b16 %v658, %v658
        %v691 = vpack.c.b16 %v659, %v659
        %v692 = vpack.c.b16 %v660, %v660
        %v693 = vpack.c.b16 %v661, %v661
        %v694 = vpack.c.b16 %v662, %v662
        %v695 = vpack.c.b16 %v663, %v663
        %v696 = vpack.c.b16 %v664, %v664
        %v697 = vpack.c.b16 %v665, %v665
        %v698 = vpack.c.b16 %v666, %v666
        %v699 = vpack.c.b16 %v667, %v667
        %v700 = vpack.c.b16 %v668, %v668
        %v701 = vpack.c.b16 %v669, %v669
        %v702 = vpack.c.b16 %v670, %v670
        %v703 = vpack.c.b16 %v671, %v671
        %v704 = vpack.c.b16 %v672, %v672
        %v705 = vpack.c.b16 %v673, %v673
        %v706 = vpack.c.b16 %v674, %v674
        %v707 = vpack.c.b16 %v675, %v675
        %v708 = vpack.c.b16 %v676, %v676
        %v709 = vpack.c.b16 %v677, %v677
        %v710 = vpack.c.b16 %v678, %v678
        %743 = vst [vmem:[%s254] sm:$0xf] %v679
        %744 = vst [vmem:[%s254 + $0x4] sm:$0xf] %v680
        %745 = vst [vmem:[%s254 + $0x8] sm:$0xf] %v681
        %746 = vst [vmem:[%s254 + $0xc] sm:$0xf] %v682
        %747 = vst [vmem:[%s254 + $0x10] sm:$0xf] %v683
        %748 = vst [vmem:[%s254 + $0x14] sm:$0xf] %v684
        %749 = vst [vmem:[%s254 + $0x18] sm:$0xf] %v685
        %750 = vst [vmem:[%s254 + $0x1c] sm:$0xf] %v686
        %751 = vst [vmem:[%s254 + $0x20] sm:$0xf] %v687
        %752 = vst [vmem:[%s254 + $0x24] sm:$0xf] %v688
        %753 = vst [vmem:[%s254 + $0x28] sm:$0xf] %v689
        %754 = vst [vmem:[%s254 + $0x2c] sm:$0xf] %v690
        %755 = vst [vmem:[%s254 + $0x30] sm:$0xf] %v691
        %756 = vst [vmem:[%s254 + $0x34] sm:$0xf] %v692
        %757 = vst [vmem:[%s254 + $0x38] sm:$0xf] %v693
        %758 = vst [vmem:[%s254 + $0x3c] sm:$0xf] %v694
        %759 = vst [vmem:[%s254 + $0x40] sm:$0xf] %v695
        %760 = vst [vmem:[%s254 + $0x44] sm:$0xf] %v696
        %761 = vst [vmem:[%s254 + $0x48] sm:$0xf] %v697
        %762 = vst [vmem:[%s254 + $0x4c] sm:$0xf] %v698
        %763 = vst [vmem:[%s254 + $0x50] sm:$0xf] %v699
        %764 = vst [vmem:[%s254 + $0x54] sm:$0xf] %v700
        %765 = vst [vmem:[%s254 + $0x58] sm:$0xf] %v701
        %766 = vst [vmem:[%s254 + $0x5c] sm:$0xf] %v702
        %767 = vst [vmem:[%s254 + $0x60] sm:$0xf] %v703
        %768 = vst [vmem:[%s254 + $0x64] sm:$0xf] %v704
        %769 = vst [vmem:[%s254 + $0x68] sm:$0xf] %v705
        %770 = vst [vmem:[%s254 + $0x6c] sm:$0xf] %v706
        %771 = vst [vmem:[%s254 + $0x70] sm:$0xf] %v707
        %772 = vst [vmem:[%s254 + $0x74] sm:$0xf] %v708
        %773 = vst [vmem:[%s254 + $0x78] sm:$0xf] %v709
        %774 = vst [vmem:[%s254 + $0x7c] sm:$0xf] %v710
        %v775 = vpack.c.bf16 %v463, %v459
        %v776 = vpack.c.bf16 %v473, %v469
        %v777 = vpack.c.bf16 %v483, %v479
        %v778 = vpack.c.bf16 %v493, %v489
        %v779 = vpack.c.bf16 %v503, %v499
        %v780 = vpack.c.bf16 %v513, %v509
        %v781 = vpack.c.bf16 %v523, %v519
        %v782 = vpack.c.bf16 %v533, %v529
        %v783 = vpack.c.bf16 %v543, %v539
        %v784 = vpack.c.bf16 %v553, %v549
        %v785 = vpack.c.bf16 %v563, %v559
        %v786 = vpack.c.bf16 %v573, %v569
        %v787 = vpack.c.bf16 %v583, %v579
        %v788 = vpack.c.bf16 %v593, %v589
        %v789 = vpack.c.bf16 %v603, %v599
        %v790 = vpack.c.bf16 %v613, %v609
        %v807 = vunpack.c.l.b16 %v775
        %v808 = vunpack.c.h.b16 %v775
        %v809 = vunpack.c.l.b16 %v776
        %v810 = vunpack.c.h.b16 %v776
        %v811 = vunpack.c.l.b16 %v777
        %v812 = vunpack.c.h.b16 %v777
        %v813 = vunpack.c.l.b16 %v778
        %v814 = vunpack.c.h.b16 %v778
        %v815 = vunpack.c.l.b16 %v779
        %v816 = vunpack.c.h.b16 %v779
        %v817 = vunpack.c.l.b16 %v780
        %v818 = vunpack.c.h.b16 %v780
        %v819 = vunpack.c.l.b16 %v781
        %v820 = vunpack.c.h.b16 %v781
        %v821 = vunpack.c.l.b16 %v782
        %v822 = vunpack.c.h.b16 %v782
        %v823 = vunpack.c.l.b16 %v783
        %v824 = vunpack.c.h.b16 %v783
        %v825 = vunpack.c.l.b16 %v784
        %v826 = vunpack.c.h.b16 %v784
        %v827 = vunpack.c.l.b16 %v785
        %v828 = vunpack.c.h.b16 %v785
        %v829 = vunpack.c.l.b16 %v786
        %v830 = vunpack.c.h.b16 %v786
        %v831 = vunpack.c.l.b16 %v787
        %v832 = vunpack.c.h.b16 %v787
        %v833 = vunpack.c.l.b16 %v788
        %v834 = vunpack.c.h.b16 %v788
        %v835 = vunpack.c.l.b16 %v789
        %v836 = vunpack.c.h.b16 %v789
        %v837 = vunpack.c.l.b16 %v790
        %v838 = vunpack.c.h.b16 %v790
        %v839 = vpack.c.b16 %v807, %v807
        %v840 = vpack.c.b16 %v808, %v808
        %v841 = vpack.c.b16 %v809, %v809
        %v842 = vpack.c.b16 %v810, %v810
        %v843 = vpack.c.b16 %v811, %v811
        %v844 = vpack.c.b16 %v812, %v812
        %v845 = vpack.c.b16 %v813, %v813
        %v846 = vpack.c.b16 %v814, %v814
        %v847 = vpack.c.b16 %v815, %v815
        %v848 = vpack.c.b16 %v816, %v816
        %v849 = vpack.c.b16 %v817, %v817
        %v850 = vpack.c.b16 %v818, %v818
        %v851 = vpack.c.b16 %v819, %v819
        %v852 = vpack.c.b16 %v820, %v820
        %v853 = vpack.c.b16 %v821, %v821
        %v854 = vpack.c.b16 %v822, %v822
        %v855 = vpack.c.b16 %v823, %v823
        %v856 = vpack.c.b16 %v824, %v824
        %v857 = vpack.c.b16 %v825, %v825
        %v858 = vpack.c.b16 %v826, %v826
        %v859 = vpack.c.b16 %v827, %v827
        %v860 = vpack.c.b16 %v828, %v828
        %v861 = vpack.c.b16 %v829, %v829
        %v862 = vpack.c.b16 %v830, %v830
        %v863 = vpack.c.b16 %v831, %v831
        %v864 = vpack.c.b16 %v832, %v832
        %v865 = vpack.c.b16 %v833, %v833
        %v866 = vpack.c.b16 %v834, %v834
        %v867 = vpack.c.b16 %v835, %v835
        %v868 = vpack.c.b16 %v836, %v836
        %v869 = vpack.c.b16 %v837, %v837
        %v870 = vpack.c.b16 %v838, %v838
        %903 = vst [vmem:[%s261] sm:$0xf] %v839
        %904 = vst [vmem:[%s261 + $0x4] sm:$0xf] %v840
        %905 = vst [vmem:[%s261 + $0x8] sm:$0xf] %v841
        %906 = vst [vmem:[%s261 + $0xc] sm:$0xf] %v842
        %907 = vst [vmem:[%s261 + $0x10] sm:$0xf] %v843
        %908 = vst [vmem:[%s261 + $0x14] sm:$0xf] %v844
        %909 = vst [vmem:[%s261 + $0x18] sm:$0xf] %v845
        %910 = vst [vmem:[%s261 + $0x1c] sm:$0xf] %v846
        %911 = vst [vmem:[%s261 + $0x20] sm:$0xf] %v847
        %912 = vst [vmem:[%s261 + $0x24] sm:$0xf] %v848
        %913 = vst [vmem:[%s261 + $0x28] sm:$0xf] %v849
        %914 = vst [vmem:[%s261 + $0x2c] sm:$0xf] %v850
        %915 = vst [vmem:[%s261 + $0x30] sm:$0xf] %v851
        %916 = vst [vmem:[%s261 + $0x34] sm:$0xf] %v852
        %917 = vst [vmem:[%s261 + $0x38] sm:$0xf] %v853
        %918 = vst [vmem:[%s261 + $0x3c] sm:$0xf] %v854
        %919 = vst [vmem:[%s261 + $0x40] sm:$0xf] %v855
        %920 = vst [vmem:[%s261 + $0x44] sm:$0xf] %v856
        %921 = vst [vmem:[%s261 + $0x48] sm:$0xf] %v857
        %922 = vst [vmem:[%s261 + $0x4c] sm:$0xf] %v858
        %923 = vst [vmem:[%s261 + $0x50] sm:$0xf] %v859
        %924 = vst [vmem:[%s261 + $0x54] sm:$0xf] %v860
        %925 = vst [vmem:[%s261 + $0x58] sm:$0xf] %v861
        %926 = vst [vmem:[%s261 + $0x5c] sm:$0xf] %v862
        %927 = vst [vmem:[%s261 + $0x60] sm:$0xf] %v863
        %928 = vst [vmem:[%s261 + $0x64] sm:$0xf] %v864
        %929 = vst [vmem:[%s261 + $0x68] sm:$0xf] %v865
        %930 = vst [vmem:[%s261 + $0x6c] sm:$0xf] %v866
        %931 = vst [vmem:[%s261 + $0x70] sm:$0xf] %v867
        %932 = vst [vmem:[%s261 + $0x74] sm:$0xf] %v868
        %933 = vst [vmem:[%s261 + $0x78] sm:$0xf] %v869
        %934 = vst [vmem:[%s261 + $0x7c] sm:$0xf] %v870
        %s935 = sand.u32 %s118, 1
        %s936 = scalar_lea.sflag [#allocation4], %s935
        %s937 = sand.u32 %s118, 1
        %s938 = smul.addr %s937, 128
        %s939 = scalar_lea.vmem [#allocation7], %s938
        %s940 = sand.u32 %s146, 1
        %s941 = scalar_lea.sflag [#allocation9], %s940
        %s942 = sand.u32 %s146, 1
        %s943 = smul.addr %s942, 128
        %s944 = scalar_lea.vmem [#allocation8], %s943
        // Predicated region
        $region41: #{tpu_custom_call.1} parent=31 // pred_check
          %p945 = pneg %p128
        $region42: #{tpu_custom_call.1} parent=31 // pred_check_branch
          %947 = sbr.rel (%p945) target = $region44
        $region43: #{tpu_custom_call.1} parent=31 // pred_region
          %s948 = smul.u32 32, %s31
          %s950 = ssub.s32 2048, 2048
          %951 = vsyncadd %s936, %s950
          %s952 = smul.addr %s30, 32
          %s953 = sadd.s32 %s948, %s952
          %s954 = smul.addr %s953, 64
          %s955 = scalar_lea.hbm %s3, %s954
          %s956 = sshll.u32 %s939, 4
          %s957 = int_to_ptr.vmem [resolvable:$true] %s956
          %962 = dma.vmem_to_hbm [thread:$0]  %s957, 2048, %s955, %s936, 64, 64, 4
        $region44: #{tpu_custom_call.1} parent=31 // pred_fallthru
          _
        // Predicated region
        $region45: #{tpu_custom_call.1} parent=31 // pred_check
          %p963 = pneg %p156
        $region46: #{tpu_custom_call.1} parent=31 // pred_check_branch
          %965 = sbr.rel (%p963) target = $region48
        $region47: #{tpu_custom_call.1} parent=31 // pred_region
          %s966 = smul.u32 32, %s31
          %s968 = ssub.s32 2048, 2048
          %969 = vsyncadd %s941, %s968
          %s970 = smul.addr %s30, 32
          %s971 = sadd.s32 %s966, %s970
          %s972 = smul.addr %s971, 64
          %s973 = scalar_lea.hbm %s4, %s972
          %s974 = sshll.u32 %s944, 4
          %s975 = int_to_ptr.vmem [resolvable:$true] %s974
          %980 = dma.vmem_to_hbm [thread:$0]  %s975, 2048, %s973, %s941, 64, 64, 4
        $region48: #{tpu_custom_call.1} parent=31 // pred_fallthru
          _
      $region32: #{tpu_custom_call.1} parent=5 // pred_fallthru
        _
      %p981 = scmp.le.s32.totalorder 2, %s21
      // Predicated region
      $region49: #{tpu_custom_call.1} parent=5 // pred_check
        %p982 = pneg %p981
      $region50: #{tpu_custom_call.1} parent=5 // pred_check_branch
        %984 = sbr.rel (%p982) target = $region52
      $region51: #{tpu_custom_call.1} parent=5 // pred_region
        %s985 = ssub.s32 %s21, 2
        // Predicated region
        $region53: #{tpu_custom_call.1} parent=51 // pred_check
          %p986 = pneg %p134
        $region54: #{tpu_custom_call.1} parent=51 // pred_check_branch
          %988 = sbr.rel (%p986) target = $region56
        $region55: #{tpu_custom_call.1} parent=51 // pred_region
          %s989 = sand.u32 %s119, 1
          %s990 = scalar_lea.sflag [#allocation4], %s989
          %s991 = sand.u32 %s119, 1
          %s992 = smul.addr %s991, 128
          %s993 = scalar_lea.vmem [#allocation7], %s992
          %994 = dma.done %s990, 2048
        $region56: #{tpu_custom_call.1} parent=51 // pred_fallthru
          _
        // Predicated region
        $region57: #{tpu_custom_call.1} parent=51 // pred_check
          %p995 = pneg %p162
        $region58: #{tpu_custom_call.1} parent=51 // pred_check_branch
          %997 = sbr.rel (%p995) target = $region60
        $region59: #{tpu_custom_call.1} parent=51 // pred_region
          %s998 = sand.u32 %s147, 1
          %s999 = scalar_lea.sflag [#allocation9], %s998
          %s1000 = sand.u32 %s147, 1
          %s1001 = smul.addr %s1000, 128
          %s1002 = scalar_lea.vmem [#allocation8], %s1001
          %1003 = dma.done %s999, 2048
        $region60: #{tpu_custom_call.1} parent=51 // pred_fallthru
          _
      $region52: #{tpu_custom_call.1} parent=5 // pred_fallthru
        _
    $region6: #{tpu_custom_call.1} parent=1 // loop_footer
      %s25 = sadd.s32 1, %s21
    $region7: #{tpu_custom_call.1} parent=1 // loop_footer_branch
      %20 = sbr.rel target = $region3
    $region8: #{tpu_custom_call.1} parent=1 // loop_exit
      _
    %1004 = vsyncpa [#allocation3], 1
    %s1005 = scalar_lea.sflag [#allocation3], 1
    %1006 = vsyncpa %s1005, 1
    %1007 = vsyncpa [#allocation6], 1
    %1008 = vsyncpa [#allocation4], 1
    %s1009 = scalar_lea.sflag [#allocation4], 1
    %1010 = vsyncpa %s1009, 1
    %1011 = vsyncpa [#allocation9], 1
    %s1012 = scalar_lea.sflag [#allocation9], 1
    %1013 = vsyncpa %s1012, 1

</llo_original>
